<compile_context>
chip_gen: v6e
topology: v6e:2x2x1
jax: 0.10.0
libtpu: 0.0.40
codegen_flags: <defaults>
</compile_context>

<pallas_src>
import jax
import jax.numpy as jnp
from jax.experimental import pallas as pl
from jax.experimental.pallas import tpu as pltpu

_LANE = 128
_SUBLANE = 8


# --------------------------------------------------------------------------
# Generation-aware VMEM sizing (v5e/v6e: 128 MiB physical, v7x: 64 MiB)
# --------------------------------------------------------------------------
def _tpu_vmem_capacity_bytes():
    try:
        return int(pltpu.get_tpu_info().vmem_capacity_bytes)
    except Exception:
        return 64 * 1024 * 1024  # conservative fallback (v7x physical)


def _vmem_limit_bytes():
    # Scoped limit for the kernel: stay well under physical VMEM on every gen.
    return min(int(_tpu_vmem_capacity_bytes() * 3 // 4), 96 * 1024 * 1024)


def _choose_r_tile(rows, n_batch, resident_units):
    """Pick the spatial row-tile (multiple of 8) of the lane-dense view.

    resident_units = number of (r_tile, 128) f32 rows resident per grid step
    (double-buffered input/output blocks + in-kernel temporaries).
    """
    budget = min(_tpu_vmem_capacity_bytes() // 2, 40 * 1024 * 1024)
    bytes_per_row = resident_units * _LANE * 4
    r = budget // max(bytes_per_row, 1)
    r = max(_SUBLANE, (r // _SUBLANE) * _SUBLANE)
    # ~512-1024 sublane rows already reach ~85% of HBM roofline; larger tiles
    # only reduce the number of grid steps available for megacore / pipelining.
    r = min(r, 1024, rows)
    # Guarantee enough grid steps for megacore sharding + DMA/compute overlap.
    min_steps = 8
    while r > _SUBLANE and n_batch * pl.cdiv(rows, r) < min_steps:
        r = max(_SUBLANE, ((r // 2) // _SUBLANE) * _SUBLANE)
    return r


# --------------------------------------------------------------------------
# Lane-dense reshaping (minimal padding: only to a multiple of 8*128 lanes)
# --------------------------------------------------------------------------
def _to_lane_dense(x, rows):
    """(N, C, H, W) -> (N, C, rows, 128) in the input's native dtype."""
    n, c, h, w = x.shape
    s = h * w
    x = x.reshape(n, c, s)
    pad = rows * _LANE - s
    if pad:
        x = jnp.pad(x, ((0, 0), (0, 0), (0, pad)))
    return x.reshape(n, c, rows, _LANE)


def _from_lane_dense(y, h, w):
    """(N, C, rows, 128) -> (N, C, H, W), dropping spatial padding."""
    n, c, rows, lanes = y.shape
    s = h * w
    flat = y.reshape(n, c, rows * lanes)
    if rows * lanes != s:
        flat = flat[:, :, :s]
    return flat.reshape(n, c, h, w)


# --------------------------------------------------------------------------
# Fused ProximalTransmissionBlock + ProximalDehazingBlock kernel
# --------------------------------------------------------------------------
def _fused_proximal_kernel(lam_ref, p_ref, q1_ref, t_ref, q2_ref,
                           t_out_ref, q_out_ref):
    # lam_ref : SMEM (2,)  -> [trans_lambda, dehaze_lambda]
    # p_ref   : VMEM (1, C,  r, 128)  img
    # q1_ref  : VMEM (1, C,  r, 128)  stage1_img_hat
    # t_ref   : VMEM (1, Ct, r, 128)  stage1_trans (Ct in {1, C})
    # q2_ref  : VMEM (1, C,  r, 128)  stage1_img
    # t_out   : VMEM (1, 1,  r, 128)  stage2_trans_hat
    # q_out   : VMEM (1, C,  r, 128)  stage2_img_hat
    lam_t = lam_ref[0]
    lam_d = lam_ref[1]
    eps = jnp.float32(1e-07)

    p = p_ref[...].astype(jnp.float32)
    q1 = q1_ref[...].astype(jnp.float32)
    tp = t_ref[...].astype(jnp.float32)
    q2 = q2_ref[...].astype(jnp.float32)

    c = jnp.float32(p.shape[1])

    # ---- ProximalTransmissionBlock ----
    stored = 1.0 - q1
    stored = jnp.where(stored == 0.0, eps, stored)
    inv = pl.reciprocal(stored)                     # exact; reused twice
    sum_inv = jnp.sum(inv, axis=1, keepdims=True)

    if tp.shape[1] == 1:
        # Single-channel transmission: factor the broadcast out of the reduce.
        f1 = c - jnp.sum(p, axis=1, keepdims=True) + lam_t * (tp * sum_inv)
    else:
        f1 = (c - jnp.sum(p, axis=1, keepdims=True)
              + lam_t * jnp.sum(tp * inv, axis=1, keepdims=True))
    f2 = c - jnp.sum(q1, axis=1, keepdims=True) + lam_t * sum_inv
    f2 = jnp.where(f2 == 0.0, eps, f2)

    t_hat = jnp.clip(f1 / f2, 0.05, 0.999)          # (1, 1, r, 128)
    t_out_ref[...] = t_hat.astype(t_out_ref.dtype)

    # ---- ProximalDehazingBlock (consumes the in-register t_hat) ----
    tt = t_hat * t_hat
    d2 = tt + lam_d
    d2 = jnp.where(d2 == 0.0, eps, d2)
    d1 = t_hat * p + (tt - t_hat) + lam_d * q2      # broadcast over channels
    q_out_ref[...] = jnp.clip(d1 / d2, 0.0, 1.0).astype(q_out_ref.dtype)


def fused_proximal_blocks(img, stage1_img_hat, stage1_trans, stage1_img,
                          trans_lambda, dehaze_lambda):
    """Returns (stage2_trans_hat (N,1,H,W), stage2_img_hat (N,C,H,W))."""
    n, c, h, w = img.shape
    ct = stage1_trans.shape[1]
    s = h * w
    # Pad spatial only to a multiple of 8*128 (lane-dense minimum), then let
    # the last grid block along the row axis be partial.
    rows = max(_SUBLANE, pl.cdiv(pl.cdiv(s, _LANE), _SUBLANE) * _SUBLANE)

    # Resident f32 row-units per r_tile row: double-buffered in/out blocks
    # plus a ~(2C + 6)-tile allowance for in-kernel temporaries.
    resident = 2 * (3 * c + ct) + 2 * (1 + c) + (2 * c + 6)
    r_tile = _choose_r_tile(rows, n, resident)

    lam = jnp.stack([jnp.asarray(trans_lambda, jnp.float32).reshape(()),
                     jnp.asarray(dehaze_lambda, jnp.float32).reshape(())])

    p4 = _to_lane_dense(img, rows)
    q14 = _to_lane_dense(stage1_img_hat, rows)
    t4 = _to_lane_dense(stage1_trans, rows)
    q24 = _to_lane_dense(stage1_img, rows)

    grid = (n, pl.cdiv(rows, r_tile))
    idx = lambda ni, ri: (ni, 0, ri, 0)

    t_out, q_out = pl.pallas_call(
        _fused_proximal_kernel,
        out_shape=(jax.ShapeDtypeStruct((n, 1, rows, _LANE), jnp.float32),
                   jax.ShapeDtypeStruct((n, c, rows, _LANE), jnp.float32)),
        grid=grid,
        in_specs=[
            pl.BlockSpec(memory_space=pltpu.MemorySpace.SMEM),      # lambdas
            pl.BlockSpec((1, c, r_tile, _LANE), idx),               # img
            pl.BlockSpec((1, c, r_tile, _LANE), idx),               # stage1_img_hat
            pl.BlockSpec((1, ct, r_tile, _LANE), idx),              # stage1_trans
            pl.BlockSpec((1, c, r_tile, _LANE), idx),               # stage1_img
        ],
        out_specs=(pl.BlockSpec((1, 1, r_tile, _LANE), idx),        # trans_hat
                   pl.BlockSpec((1, c, r_tile, _LANE), idx)),       # img_hat
        compiler_params=pltpu.CompilerParams(
            dimension_semantics=("parallel", "parallel"),
            vmem_limit_bytes=_vmem_limit_bytes()),
        cost_estimate=pl.CostEstimate(
            flops=(14 * c + 10) * n * s,
            transcendentals=0,
            bytes_accessed=4 * n * s * (4 * c + ct + 1)),
    )(lam, p4, q14, t4, q24)

    return _from_lane_dense(t_out, h, w), _from_lane_dense(q_out, h, w)


# --------------------------------------------------------------------------
# Basic_block_fix_Plus forward (proximal portion)
# --------------------------------------------------------------------------
def basic_block_fix_plus_proximal(img, stage1_trans, stage1_img,
                                  stage1_trans_hat, stage1_img_hat,
                                  trans_lambda, dehaze_lambda, last=True):
    """Proximal part of Basic_block_fix_Plus.forward.

    Returns (stage2_trans, stage2_trans_hat, stage2_img_hat).
    # TODO(synk): MST refinement nets (trans_net when last=False, dehaze_net for
    # stage2_img) are multi-scale spectral transformers, not implemented here.
    """
    del stage1_trans_hat  # unused by the reference forward as well
    stage2_trans_hat, stage2_img_hat = fused_proximal_blocks(
        img, stage1_img_hat, stage1_trans, stage1_img,
        trans_lambda, dehaze_lambda)
    stage2_trans = stage2_trans_hat if last else None
    return stage2_trans, stage2_trans_hat, stage2_img_hat


# --------------------------------------------------------------------------
# Pure-JAX references (mirror the PyTorch forwards)
# --------------------------------------------------------------------------
def proximal_transmission_block_ref(p, q_prev, t_prev, step_lambda):
    lam = jnp.asarray(step_lambda, dtype=jnp.float32).reshape(())
    eps = 1e-07
    stored = 1.0 - q_prev
    stored = jnp.where(stored == 0.0, eps, stored)
    f1 = jnp.sum(1.0 - p + lam * t_prev / stored, axis=1, keepdims=True)
    f2 = jnp.sum(1.0 - q_prev + lam / stored, axis=1, keepdims=True)
    f2 = jnp.where(f2 == 0.0, eps, f2)
    return jnp.clip(f1 / f2, 0.05, 0.999)


def proximal_dehazing_block_ref(p, q_prev, t, step_lambda):
    lam = jnp.asarray(step_lambda, dtype=jnp.float32).reshape(())
    eps = 1e-07
    tt = t * t
    f1 = t * p + tt - t + lam * q_prev
    f2 = tt + lam * jnp.ones_like(p)
    f2 = jnp.where(f2 == 0.0, eps, f2)
    return jnp.clip(f1 / f2, 0.0, 1.0)


if __name__ == "__main__":
    # Deterministic parameter init: step_lambda = sigmoid(0.3) * 1.0
    step_lambda = jax.nn.sigmoid(jnp.float32(0.3)) * 1.0

    key = jax.random.PRNGKey(0)
    k1, k2, k3, k4 = jax.random.split(key, 4)
    N, C, H, W = 2, 3, 16, 16
    img = jax.random.uniform(k1, (N, C, H, W), dtype=jnp.float32)
    stage1_img = jax.random.uniform(k2, (N, C, H, W), dtype=jnp.float32)
    stage1_img_hat = jax.random.uniform(k3, (N, C, H, W), dtype=jnp.float32)
    stage1_trans = jax.random.uniform(k4, (N, 1, H, W), dtype=jnp.float32)
    stage1_trans_hat = stage1_trans  # unused by the forward

    stage2_trans, stage2_trans_hat, stage2_img_hat = basic_block_fix_plus_proximal(
        img, stage1_trans, stage1_img, stage1_trans_hat, stage1_img_hat,
        step_lambda, step_lambda, last=True)
    jax.block_until_ready((stage2_trans, stage2_trans_hat, stage2_img_hat))

    t_ref = proximal_transmission_block_ref(img, stage1_img_hat, stage1_trans,
                                            step_lambda)
    q_ref = proximal_dehazing_block_ref(img, stage1_img, t_ref, step_lambda)

    assert stage2_trans_hat.shape == (N, 1, H, W)
    assert stage2_img_hat.shape == (N, C, H, W)
    assert jnp.allclose(stage2_trans_hat, t_ref, atol=1e-5, rtol=1e-5)
    assert jnp.allclose(stage2_img_hat, q_ref, atol=1e-5, rtol=1e-5)
    assert jnp.array_equal(stage2_trans, stage2_trans_hat)

    # Second case: non-multiple-of-128 spatial size exercises the padding path.
    N2, C2, H2, W2 = 1, 3, 17, 19
    kk = jax.random.split(jax.random.PRNGKey(1), 4)
    img2 = jax.random.uniform(kk[0], (N2, C2, H2, W2), dtype=jnp.float32)
    q12 = jax.random.uniform(kk[1], (N2, C2, H2, W2), dtype=jnp.float32)
    t2 = jax.random.uniform(kk[2], (N2, 1, H2, W2), dtype=jnp.float32)
    q22 = jax.random.uniform(kk[3], (N2, C2, H2, W2), dtype=jnp.float32)
    t_hat2, q_hat2 = fused_proximal_blocks(img2, q12, t2, q22,
                                           step_lambda, step_lambda)
    jax.block_until_ready((t_hat2, q_hat2))
    t_ref2 = proximal_transmission_block_ref(img2, q12, t2, step_lambda)
    q_ref2 = proximal_dehazing_block_ref(img2, q22, t_ref2, step_lambda)
    assert t_hat2.shape == (N2, 1, H2, W2)
    assert q_hat2.shape == (N2, C2, H2, W2)
    assert jnp.allclose(t_hat2, t_ref2, atol=1e-5, rtol=1e-5)
    assert jnp.allclose(q_hat2, q_ref2, atol=1e-5, rtol=1e-5)

    print("KERNEL_OK")
</pallas_src>

<mosaic_0001>
module attributes {stable_mosaic.version = 11 : i64} {
  func.func @_fused_proximal_kernel(%arg0: i32, %arg1: i32, %arg2: memref<2xf32, #tpu.memory_space<smem>>, %arg3: memref<1x3x8x128xf32, #tpu.memory_space<vmem>>, %arg4: memref<1x3x8x128xf32, #tpu.memory_space<vmem>>, %arg5: memref<1x1x8x128xf32, #tpu.memory_space<vmem>>, %arg6: memref<1x3x8x128xf32, #tpu.memory_space<vmem>>, %arg7: memref<1x1x8x128xf32, #tpu.memory_space<vmem>>, %arg8: memref<1x3x8x128xf32, #tpu.memory_space<vmem>>) attributes {dimension_semantics = [#tpu.dimension_semantics<parallel>, #tpu.dimension_semantics<parallel>], iteration_bounds = array<i64: 2, 1>, scalar_prefetch = 0 : i64, scratch_operands = 0 : i64, tpu.core_type = #tpu.core_type<tc>, window_params = [{transform_indices = @transform_0, window_bounds = array<i64: 2>}, {transform_indices = @transform_1, window_bounds = array<i64: 1, 3, 8, 128>}, {transform_indices = @transform_2, window_bounds = array<i64: 1, 3, 8, 128>}, {transform_indices = @transform_3, window_bounds = array<i64: 1, 1, 8, 128>}, {transform_indices = @transform_4, window_bounds = array<i64: 1, 3, 8, 128>}, {transform_indices = @transform_5, window_bounds = array<i64: 1, 1, 8, 128>}, {transform_indices = @transform_6, window_bounds = array<i64: 1, 3, 8, 128>}]} {
    %c0 = arith.constant 0 : index
    %0 = memref.load %arg2[%c0] : memref<2xf32, #tpu.memory_space<smem>>
    %c1 = arith.constant 1 : index
    %1 = memref.load %arg2[%c1] : memref<2xf32, #tpu.memory_space<smem>>
    %c0_0 = arith.constant 0 : index
    %c0_1 = arith.constant 0 : index
    %c0_2 = arith.constant 0 : index
    %c0_3 = arith.constant 0 : index
    %2 = vector.load %arg3[%c0_0, %c0_1, %c0_2, %c0_3] : memref<1x3x8x128xf32, #tpu.memory_space<vmem>>, vector<1x3x8x128xf32>
    %c0_4 = arith.constant 0 : index
    %c0_5 = arith.constant 0 : index
    %c0_6 = arith.constant 0 : index
    %c0_7 = arith.constant 0 : index
    %3 = vector.load %arg4[%c0_4, %c0_5, %c0_6, %c0_7] : memref<1x3x8x128xf32, #tpu.memory_space<vmem>>, vector<1x3x8x128xf32>
    %c0_8 = arith.constant 0 : index
    %c0_9 = arith.constant 0 : index
    %c0_10 = arith.constant 0 : index
    %c0_11 = arith.constant 0 : index
    %4 = vector.load %arg5[%c0_8, %c0_9, %c0_10, %c0_11] : memref<1x1x8x128xf32, #tpu.memory_space<vmem>>, vector<1x1x8x128xf32>
    %c0_12 = arith.constant 0 : index
    %c0_13 = arith.constant 0 : index
    %c0_14 = arith.constant 0 : index
    %c0_15 = arith.constant 0 : index
    %5 = vector.load %arg6[%c0_12, %c0_13, %c0_14, %c0_15] : memref<1x3x8x128xf32, #tpu.memory_space<vmem>>, vector<1x3x8x128xf32>
    %cst = arith.constant 1.000000e+00 : f32
    %6 = vector.broadcast %cst : f32 to vector<1x3x8x128xf32>
    %7 = arith.subf %6, %3 : vector<1x3x8x128xf32>
    %cst_16 = arith.constant 0.000000e+00 : f32
    %8 = vector.broadcast %cst_16 : f32 to vector<1x3x8x128xf32>
    %9 = arith.cmpf oeq, %7, %8 : vector<1x3x8x128xf32>
    %cst_17 = arith.constant 1.000000e-07 : f32
    %10 = vector.broadcast %cst_17 : f32 to vector<1x3x8x128xf32>
    %11 = arith.select %9, %10, %7 : vector<1x3x8x128xi1>, vector<1x3x8x128xf32>
    %12 = tpu.reciprocal %11 : vector<1x3x8x128xf32> -> vector<1x3x8x128xf32>
    %cst_18 = arith.constant dense<0.000000e+00> : vector<1x8x128xf32>
    %13 = vector.multi_reduction <add>, %12, %cst_18 [1] : vector<1x3x8x128xf32> to vector<1x8x128xf32>
    %14 = vector.shape_cast %13 : vector<1x8x128xf32> to vector<1x1x8x128xf32>
    %cst_19 = arith.constant dense<0.000000e+00> : vector<1x8x128xf32>
    %15 = vector.multi_reduction <add>, %2, %cst_19 [1] : vector<1x3x8x128xf32> to vector<1x8x128xf32>
    %16 = vector.shape_cast %15 : vector<1x8x128xf32> to vector<1x1x8x128xf32>
    %cst_20 = arith.constant 3.000000e+00 : f32
    %17 = vector.broadcast %cst_20 : f32 to vector<1x1x8x128xf32>
    %18 = arith.subf %17, %16 : vector<1x1x8x128xf32>
    %19 = arith.mulf %4, %14 : vector<1x1x8x128xf32>
    %20 = vector.broadcast %0 : f32 to vector<1x1x8x128xf32>
    %21 = arith.mulf %20, %19 : vector<1x1x8x128xf32>
    %22 = arith.addf %18, %21 : vector<1x1x8x128xf32>
    %cst_21 = arith.constant dense<0.000000e+00> : vector<1x8x128xf32>
    %23 = vector.multi_reduction <add>, %3, %cst_21 [1] : vector<1x3x8x128xf32> to vector<1x8x128xf32>
    %24 = vector.shape_cast %23 : vector<1x8x128xf32> to vector<1x1x8x128xf32>
    %cst_22 = arith.constant 3.000000e+00 : f32
    %25 = vector.broadcast %cst_22 : f32 to vector<1x1x8x128xf32>
    %26 = arith.subf %25, %24 : vector<1x1x8x128xf32>
    %27 = vector.broadcast %0 : f32 to vector<1x1x8x128xf32>
    %28 = arith.mulf %27, %14 : vector<1x1x8x128xf32>
    %29 = arith.addf %26, %28 : vector<1x1x8x128xf32>
    %cst_23 = arith.constant 0.000000e+00 : f32
    %30 = vector.broadcast %cst_23 : f32 to vector<1x1x8x128xf32>
    %31 = arith.cmpf oeq, %29, %30 : vector<1x1x8x128xf32>
    %cst_24 = arith.constant 1.000000e-07 : f32
    %32 = vector.broadcast %cst_24 : f32 to vector<1x1x8x128xf32>
    %33 = arith.select %31, %32, %29 : vector<1x1x8x128xi1>, vector<1x1x8x128xf32>
    %34 = arith.divf %22, %33 : vector<1x1x8x128xf32>
    %cst_25 = arith.constant 5.000000e-02 : f32
    %cst_26 = arith.constant 9.990000e-01 : f32
    %35 = vector.broadcast %cst_25 : f32 to vector<1x1x8x128xf32>
    %36 = arith.maximumf %35, %34 : vector<1x1x8x128xf32>
    %37 = vector.broadcast %cst_26 : f32 to vector<1x1x8x128xf32>
    %38 = arith.minimumf %37, %36 : vector<1x1x8x128xf32>
    %c0_27 = arith.constant 0 : index
    %c0_28 = arith.constant 0 : index
    %c0_29 = arith.constant 0 : index
    %c0_30 = arith.constant 0 : index
    %39 = vector.load %arg7[%c0_27, %c0_28, %c0_29, %c0_30] : memref<1x1x8x128xf32, #tpu.memory_space<vmem>>, vector<1x1x8x128xf32>
    tpu.vector_store %arg7[%c0_27, %c0_28, %c0_29, %c0_30], %38 {strides = array<i32>} : memref<1x1x8x128xf32, #tpu.memory_space<vmem>>, vector<1x1x8x128xf32>,
    %40 = arith.mulf %38, %38 : vector<1x1x8x128xf32>
    %41 = vector.broadcast %1 : f32 to vector<1x1x8x128xf32>
    %42 = arith.addf %40, %41 : vector<1x1x8x128xf32>
    %cst_31 = arith.constant 0.000000e+00 : f32
    %43 = vector.broadcast %cst_31 : f32 to vector<1x1x8x128xf32>
    %44 = arith.cmpf oeq, %42, %43 : vector<1x1x8x128xf32>
    %cst_32 = arith.constant 1.000000e-07 : f32
    %45 = vector.broadcast %cst_32 : f32 to vector<1x1x8x128xf32>
    %46 = arith.select %44, %45, %42 : vector<1x1x8x128xi1>, vector<1x1x8x128xf32>
    %47 = vector.broadcast %38 : vector<1x1x8x128xf32> to vector<1x3x8x128xf32>
    %48 = arith.mulf %47, %2 : vector<1x3x8x128xf32>
    %49 = arith.subf %40, %38 : vector<1x1x8x128xf32>
    %50 = vector.broadcast %49 : vector<1x1x8x128xf32> to vector<1x3x8x128xf32>
    %51 = arith.addf %48, %50 : vector<1x3x8x128xf32>
    %52 = vector.broadcast %1 : f32 to vector<1x3x8x128xf32>
    %53 = arith.mulf %52, %5 : vector<1x3x8x128xf32>
    %54 = arith.addf %51, %53 : vector<1x3x8x128xf32>
    %55 = vector.broadcast %46 : vector<1x1x8x128xf32> to vector<1x3x8x128xf32>
    %56 = arith.divf %54, %55 : vector<1x3x8x128xf32>
    %cst_33 = arith.constant 0.000000e+00 : f32
    %cst_34 = arith.constant 1.000000e+00 : f32
    %57 = vector.broadcast %cst_33 : f32 to vector<1x3x8x128xf32>
    %58 = arith.maximumf %57, %56 : vector<1x3x8x128xf32>
    %59 = vector.broadcast %cst_34 : f32 to vector<1x3x8x128xf32>
    %60 = arith.minimumf %59, %58 : vector<1x3x8x128xf32>
    %c0_35 = arith.constant 0 : index
    %c0_36 = arith.constant 0 : index
    %c0_37 = arith.constant 0 : index
    %c0_38 = arith.constant 0 : index
    %61 = vector.load %arg8[%c0_35, %c0_36, %c0_37, %c0_38] : memref<1x3x8x128xf32, #tpu.memory_space<vmem>>, vector<1x3x8x128xf32>
    tpu.vector_store %arg8[%c0_35, %c0_36, %c0_37, %c0_38], %60 {strides = array<i32>} : memref<1x3x8x128xf32, #tpu.memory_space<vmem>>, vector<1x3x8x128xf32>,
    return
  }
  func.func @transform_0(%arg0: i32, %arg1: i32) -> i32 {
    %c0_i32 = arith.constant 0 : i32
    %c0_i32_0 = arith.constant 0 : i32
    return %c0_i32 : i32
  }
  func.func @transform_1(%arg0: i32, %arg1: i32) -> (i32, i32, i32, i32) {
    %c0_i32 = arith.constant 0 : i32
    %c0_i32_0 = arith.constant 0 : i32
    %c0_i32_1 = arith.constant 0 : i32
    return %arg0, %c0_i32, %arg1, %c0_i32_0 : i32, i32, i32, i32
  }
  func.func @transform_2(%arg0: i32, %arg1: i32) -> (i32, i32, i32, i32) {
    %c0_i32 = arith.constant 0 : i32
    %c0_i32_0 = arith.constant 0 : i32
    %c0_i32_1 = arith.constant 0 : i32
    return %arg0, %c0_i32, %arg1, %c0_i32_0 : i32, i32, i32, i32
  }
  func.func @transform_3(%arg0: i32, %arg1: i32) -> (i32, i32, i32, i32) {
    %c0_i32 = arith.constant 0 : i32
    %c0_i32_0 = arith.constant 0 : i32
    %c0_i32_1 = arith.constant 0 : i32
    return %arg0, %c0_i32, %arg1, %c0_i32_0 : i32, i32, i32, i32
  }
  func.func @transform_4(%arg0: i32, %arg1: i32) -> (i32, i32, i32, i32) {
    %c0_i32 = arith.constant 0 : i32
    %c0_i32_0 = arith.constant 0 : i32
    %c0_i32_1 = arith.constant 0 : i32
    return %arg0, %c0_i32, %arg1, %c0_i32_0 : i32, i32, i32, i32
  }
  func.func @transform_5(%arg0: i32, %arg1: i32) -> (i32, i32, i32, i32) {
    %c0_i32 = arith.constant 0 : i32
    %c0_i32_0 = arith.constant 0 : i32
    %c0_i32_1 = arith.constant 0 : i32
    return %arg0, %c0_i32, %arg1, %c0_i32_0 : i32, i32, i32, i32
  }
  func.func @transform_6(%arg0: i32, %arg1: i32) -> (i32, i32, i32, i32) {
    %c0_i32 = arith.constant 0 : i32
    %c0_i32_0 = arith.constant 0 : i32
    %c0_i32_1 = arith.constant 0 : i32
    return %arg0, %c0_i32, %arg1, %c0_i32_0 : i32, i32, i32, i32
  }
}

</mosaic_0001>

<llo_original>
// kernel: tpu_custom_call.1
$region0: #{tpu_custom_call.1}
  #allocation0 [shape = 'u32[]', space=smem, size = 0x4, offset = 0x4, fixed_abs, tag = 'smem constant byte address 0x4 - core index']
  #allocation1 [shape = 'u32[144,128]{1,0:T(1,128)}', space=vmem, size = 0x12000, scoped, tag = 'internal scratch']
  %s0 = inlined_call_operand.hbm [shape: f32[2], index: 0, kind: input, shape index: {}]
  %s1 = inlined_call_operand.hbm [shape: f32[2,3,8,128], index: 1, kind: input, shape index: {}]
  %s2 = inlined_call_operand.hbm [shape: f32[2,3,8,128], index: 2, kind: input, shape index: {}]
  %s3 = inlined_call_operand.hbm [shape: f32[2,1,8,128], index: 3, kind: input, shape index: {}]
  %s4 = inlined_call_operand.hbm [shape: f32[2,3,8,128], index: 4, kind: input, shape index: {}]
  %s5 = inlined_call_operand.hbm [shape: f32[2,1,8,128], index: 5, kind: output, shape index: {0}]
  %s6 = inlined_call_operand.hbm [shape: f32[2,3,8,128], index: 6, kind: output, shape index: {1}]
  %7 = xla_tuple %s5, %s6
  %s8 = sld [smem:[#allocation0]]
  $region81: #{tpu_custom_call.1} parent=0
    _
  %s10 = ssub.s32 1, %s8
  %s11 = scalar_select 0, %s10, %s8
  $region1: #{tpu_custom_call.1} parent=0
    #allocation2 [shape = 'u8[512]{0}', space=smem, size = 0x200, scoped, tag = 'input window, operand 0, single buffered']
    #allocation3 [shape = 's32[2]{0}', space=sflag, size = 0x8, scoped, tag = 'scoped memory for tpu_custom_call.1']
    #allocation4 [shape = 's32[2]{0}', space=sflag, size = 0x8, scoped, tag = 'scoped memory for tpu_custom_call.1']
    #allocation5 [shape = 's32[2]{0}', space=sflag, size = 0x8, scoped, tag = 'scoped memory for tpu_custom_call.1']
    #allocation6 [shape = 'u8[24576]{0}', space=vmem, size = 0x6000, scoped, tag = 'input window, operand 1']
    #allocation7 [shape = 'u8[24576]{0}', space=vmem, size = 0x6000, scoped, tag = 'input window, operand 2']
    #allocation8 [shape = 's32[2]{0}', space=sflag, size = 0x8, scoped, tag = 'scoped memory for tpu_custom_call.1']
    #allocation9 [shape = 'u8[8192]{0}', space=vmem, size = 0x2000, scoped, tag = 'input window, operand 3']
    #allocation10 [shape = 'u8[24576]{0}', space=vmem, size = 0x6000, scoped, tag = 'input window, operand 4']
    #allocation11 [shape = 's32[2]{0}', space=sflag, size = 0x8, scoped, tag = 'scoped memory for tpu_custom_call.1']
    #allocation12 [shape = 'u8[8192]{0}', space=vmem, size = 0x2000, scoped, tag = 'output window, operand 0']
    #allocation13 [shape = 'u8[24576]{0}', space=vmem, size = 0x6000, scoped, tag = 'output window, operand 1']
    #allocation14 [shape = 's32[2]{0}', space=sflag, size = 0x8, scoped, tag = 'scoped memory for tpu_custom_call.1']
    %12 = vsyncpa [#allocation5], 0
    %13 = vsyncpa [#allocation3], 0
    %s14 = scalar_lea.sflag [#allocation3], 1
    %15 = vsyncpa %s14, 0
    %16 = vsyncpa [#allocation8], 0
    %s17 = scalar_lea.sflag [#allocation8], 1
    %18 = vsyncpa %s17, 0
    %19 = vsyncpa [#allocation11], 0
    %s20 = scalar_lea.sflag [#allocation11], 1
    %21 = vsyncpa %s20, 0
    %22 = vsyncpa [#allocation4], 0
    %s23 = scalar_lea.sflag [#allocation4], 1
    %24 = vsyncpa %s23, 0
    %25 = vsyncpa [#allocation14], 0
    %s26 = scalar_lea.sflag [#allocation14], 1
    %27 = vsyncpa %s26, 0
    loop: start=0, step=1, limit=4
    $region2: #{tpu_custom_call.1} parent=1 // loop_pre_header
      _
    $region3: #{tpu_custom_call.1} parent=1 // loop_header
      %s29 = sphi 0, %s33
      %p30 = scmp.ge.s32.totalorder %s29, 4
      %s36 = sphi 0, %s48
      %s37 = sphi 0, %s44
      %s38 = sphi 0, %s36
      %s39 = sphi 0, %s37
      %s40 = sphi 0, %s38
      %s41 = sphi 0, %s39
      %s49 = sphi 0, %s49
      %s51 = sphi 0, %s49
      %s52 = sphi 0, %s51
      %s66 = sphi 0, %s52
      %s74 = sphi 0, %s76
      %s77 = sphi 0, %s74
      %s78 = sphi 0, %s77
      %s94 = sphi 0, %s78
      %s102 = sphi 0, %s104
      %s105 = sphi 0, %s102
      %s106 = sphi 0, %s105
      %s122 = sphi 0, %s106
      %s130 = sphi 0, %s132
      %s133 = sphi 0, %s130
      %s134 = sphi 0, %s133
      %s150 = sphi 0, %s134
      %s158 = sphi 0, %s160
      %s161 = sphi 0, %s158
      %s162 = sphi 0, %s161
      %s178 = sphi 0, %s162
      %s186 = sphi 0, %s188
      %s189 = sphi 0, %s186
      %s190 = sphi 0, %s189
      %s206 = sphi 0, %s190
      %s214 = sphi 0, %s216
      %s217 = sphi 0, %s214
      %s218 = sphi 0, %s217
      %s234 = sphi 0, %s218
    $region4: #{tpu_custom_call.1} parent=1 // loop_header_branch
      %32 = sbr.rel (%p30) target = $region8
    $region5: #{tpu_custom_call.1} parent=1 // loop_body
      %s34 = ssub.s32 %s29, 1
      %s35 = ssub.s32 %s29, 2
      %s42 = sadd.s32 1, %s37
      %p43 = scmp.ge.s32.totalorder %s42, 1
      %s44 = scalar_select %p43, 0, %s42
      %s45 = sadd.s32 1, %s36
      %s46 = scalar_select %p43, %s45, %s36
      %p47 = scmp.ge.s32.totalorder %s46, 2
      %s48 = scalar_select %p47, 0, %s46
      %s50 = sadd.s32 %s49, 1
      %p53 = scmp.eq.s32.totalorder %s29, 1
      %p54 = scmp.ne.s32.totalorder %s49, %s51
      %p55 = scmp.eq.s32.totalorder %s29, 0
      %p56 = por %p54, %p55
      %p57 = scmp.ne.s32.totalorder %s49, %s51
      %p58 = scmp.eq.s32.totalorder %s34, 1
      %p59 = por %p57, %p58
      %p60 = scmp.ne.s32.totalorder %s51, %s52
      %p61 = scmp.eq.s32.totalorder %s34, 0
      %p62 = por %p60, %p61
      %p63 = scmp.ne.s32.totalorder %s51, %s52
      %p64 = scmp.eq.s32.totalorder %s35, 1
      %p65 = por %p63, %p64
      %p67 = scmp.ne.s32.totalorder %s52, %s66
      %p68 = scmp.eq.s32.totalorder %s35, 0
      %p69 = por %p67, %p68
      %s70 = ssub.s32 %s36, %s48
      %s71 = ssub.s32 %s37, %s44
      %s72 = sor.u32 %s70, %s71
      %p73 = scmp.eq.s32.totalorder %s72, 0
      %s75 = sadd.s32 %s74, 1
      %s76 = scalar_select %p73, %s74, %s75
      %p79 = pneg %p73
      %p80 = scmp.eq.s32.totalorder %s29, 1
      %p81 = por %p79, %p80
      %p82 = scmp.ne.s32.totalorder %s74, %s77
      %p83 = scmp.eq.s32.totalorder %s29, 0
      %p84 = por %p82, %p83
      %p85 = scmp.ne.s32.totalorder %s74, %s77
      %p86 = scmp.eq.s32.totalorder %s34, 1
      %p87 = por %p85, %p86
      %p88 = scmp.ne.s32.totalorder %s77, %s78
      %p89 = scmp.eq.s32.totalorder %s34, 0
      %p90 = por %p88, %p89
      %p91 = scmp.ne.s32.totalorder %s77, %s78
      %p92 = scmp.eq.s32.totalorder %s35, 1
      %p93 = por %p91, %p92
      %p95 = scmp.ne.s32.totalorder %s78, %s94
      %p96 = scmp.eq.s32.totalorder %s35, 0
      %p97 = por %p95, %p96
      %s98 = ssub.s32 %s36, %s48
      %s99 = ssub.s32 %s37, %s44
      %s100 = sor.u32 %s98, %s99
      %p101 = scmp.eq.s32.totalorder %s100, 0
      %s103 = sadd.s32 %s102, 1
      %s104 = scalar_select %p101, %s102, %s103
      %p107 = pneg %p101
      %p108 = scmp.eq.s32.totalorder %s29, 1
      %p109 = por %p107, %p108
      %p110 = scmp.ne.s32.totalorder %s102, %s105
      %p111 = scmp.eq.s32.totalorder %s29, 0
      %p112 = por %p110, %p111
      %p113 = scmp.ne.s32.totalorder %s102, %s105
      %p114 = scmp.eq.s32.totalorder %s34, 1
      %p115 = por %p113, %p114
      %p116 = scmp.ne.s32.totalorder %s105, %s106
      %p117 = scmp.eq.s32.totalorder %s34, 0
      %p118 = por %p116, %p117
      %p119 = scmp.ne.s32.totalorder %s105, %s106
      %p120 = scmp.eq.s32.totalorder %s35, 1
      %p121 = por %p119, %p120
      %p123 = scmp.ne.s32.totalorder %s106, %s122
      %p124 = scmp.eq.s32.totalorder %s35, 0
      %p125 = por %p123, %p124
      %s126 = ssub.s32 %s36, %s48
      %s127 = ssub.s32 %s37, %s44
      %s128 = sor.u32 %s126, %s127
      %p129 = scmp.eq.s32.totalorder %s128, 0
      %s131 = sadd.s32 %s130, 1
      %s132 = scalar_select %p129, %s130, %s131
      %p135 = pneg %p129
      %p136 = scmp.eq.s32.totalorder %s29, 1
      %p137 = por %p135, %p136
      %p138 = scmp.ne.s32.totalorder %s130, %s133
      %p139 = scmp.eq.s32.totalorder %s29, 0
      %p140 = por %p138, %p139
      %p141 = scmp.ne.s32.totalorder %s130, %s133
      %p142 = scmp.eq.s32.totalorder %s34, 1
      %p143 = por %p141, %p142
      %p144 = scmp.ne.s32.totalorder %s133, %s134
      %p145 = scmp.eq.s32.totalorder %s34, 0
      %p146 = por %p144, %p145
      %p147 = scmp.ne.s32.totalorder %s133, %s134
      %p148 = scmp.eq.s32.totalorder %s35, 1
      %p149 = por %p147, %p148
      %p151 = scmp.ne.s32.totalorder %s134, %s150
      %p152 = scmp.eq.s32.totalorder %s35, 0
      %p153 = por %p151, %p152
      %s154 = ssub.s32 %s36, %s48
      %s155 = ssub.s32 %s37, %s44
      %s156 = sor.u32 %s154, %s155
      %p157 = scmp.eq.s32.totalorder %s156, 0
      %s159 = sadd.s32 %s158, 1
      %s160 = scalar_select %p157, %s158, %s159
      %p163 = pneg %p157
      %p164 = scmp.eq.s32.totalorder %s29, 1
      %p165 = por %p163, %p164
      %p166 = scmp.ne.s32.totalorder %s158, %s161
      %p167 = scmp.eq.s32.totalorder %s29, 0
      %p168 = por %p166, %p167
      %p169 = scmp.ne.s32.totalorder %s158, %s161
      %p170 = scmp.eq.s32.totalorder %s34, 1
      %p171 = por %p169, %p170
      %p172 = scmp.ne.s32.totalorder %s161, %s162
      %p173 = scmp.eq.s32.totalorder %s34, 0
      %p174 = por %p172, %p173
      %p175 = scmp.ne.s32.totalorder %s161, %s162
      %p176 = scmp.eq.s32.totalorder %s35, 1
      %p177 = por %p175, %p176
      %p179 = scmp.ne.s32.totalorder %s162, %s178
      %p180 = scmp.eq.s32.totalorder %s35, 0
      %p181 = por %p179, %p180
      %s182 = ssub.s32 %s36, %s48
      %s183 = ssub.s32 %s37, %s44
      %s184 = sor.u32 %s182, %s183
      %p185 = scmp.eq.s32.totalorder %s184, 0
      %s187 = sadd.s32 %s186, 1
      %s188 = scalar_select %p185, %s186, %s187
      %p191 = pneg %p185
      %p192 = scmp.eq.s32.totalorder %s29, 1
      %p193 = por %p191, %p192
      %p194 = scmp.ne.s32.totalorder %s186, %s189
      %p195 = scmp.eq.s32.totalorder %s29, 0
      %p196 = por %p194, %p195
      %p197 = scmp.ne.s32.totalorder %s186, %s189
      %p198 = scmp.eq.s32.totalorder %s34, 1
      %p199 = por %p197, %p198
      %p200 = scmp.ne.s32.totalorder %s189, %s190
      %p201 = scmp.eq.s32.totalorder %s34, 0
      %p202 = por %p200, %p201
      %p203 = scmp.ne.s32.totalorder %s189, %s190
      %p204 = scmp.eq.s32.totalorder %s35, 1
      %p205 = por %p203, %p204
      %p207 = scmp.ne.s32.totalorder %s190, %s206
      %p208 = scmp.eq.s32.totalorder %s35, 0
      %p209 = por %p207, %p208
      %s210 = ssub.s32 %s36, %s48
      %s211 = ssub.s32 %s37, %s44
      %s212 = sor.u32 %s210, %s211
      %p213 = scmp.eq.s32.totalorder %s212, 0
      %s215 = sadd.s32 %s214, 1
      %s216 = scalar_select %p213, %s214, %s215
      %p219 = pneg %p213
      %p220 = scmp.eq.s32.totalorder %s29, 1
      %p221 = por %p219, %p220
      %p222 = scmp.ne.s32.totalorder %s214, %s217
      %p223 = scmp.eq.s32.totalorder %s29, 0
      %p224 = por %p222, %p223
      %p225 = scmp.ne.s32.totalorder %s214, %s217
      %p226 = scmp.eq.s32.totalorder %s34, 1
      %p227 = por %p225, %p226
      %p228 = scmp.ne.s32.totalorder %s217, %s218
      %p229 = scmp.eq.s32.totalorder %s34, 0
      %p230 = por %p228, %p229
      %p231 = scmp.ne.s32.totalorder %s217, %s218
      %p232 = scmp.eq.s32.totalorder %s35, 1
      %p233 = por %p231, %p232
      %p235 = scmp.ne.s32.totalorder %s218, %s234
      %p236 = scmp.eq.s32.totalorder %s35, 0
      %p237 = por %p235, %p236
      %p238 = scmp.le.s32.totalorder 1, %s29
      %p239 = scmp.lt.s32.totalorder %s29, 3
      %p240 = pnand %p238, %p239
      %p241 = pneg %p240
      // Predicated region
      $region9: #{tpu_custom_call.1} parent=5 // pred_check
        _
      $region10: #{tpu_custom_call.1} parent=5 // pred_check_branch
        %243 = sbr.rel (%p240) target = $region12
      $region11: #{tpu_custom_call.1} parent=5 // pred_region
        %s244 = ssub.s32 %s29, 1
        // Predicated region
        $region13: #{tpu_custom_call.1} parent=11 // pred_check
          %p245 = pneg %p62
        $region14: #{tpu_custom_call.1} parent=11 // pred_check_branch
          %247 = sbr.rel (%p245) target = $region16
        $region15: #{tpu_custom_call.1} parent=11 // pred_region
          %s249 = ssub.s32 16, 16
          %250 = vsyncadd [#allocation5], %s249
          %253 = dma.hbm_to_smem %s0, 16, [#allocation2], [#allocation5]
        $region16: #{tpu_custom_call.1} parent=11 // pred_fallthru
          _
      $region12: #{tpu_custom_call.1} parent=5 // pred_fallthru
        _
      %p254 = scmp.lt.s32.totalorder %s29, 2
      // Predicated region
      $region17: #{tpu_custom_call.1} parent=5 // pred_check
        %p255 = pneg %p254
      $region18: #{tpu_custom_call.1} parent=5 // pred_check_branch
        %257 = sbr.rel (%p255) target = $region20
      $region19: #{tpu_custom_call.1} parent=5 // pred_region
        // Predicated region
        $region21: #{tpu_custom_call.1} parent=19 // pred_check
          %p258 = pneg %p84
        $region22: #{tpu_custom_call.1} parent=19 // pred_check_branch
          %260 = sbr.rel (%p258) target = $region24
        $region23: #{tpu_custom_call.1} parent=19 // pred_region
          %s261 = sand.u32 %s74, 1
          %s262 = scalar_lea.sflag [#allocation3], %s261
          %s263 = sand.u32 %s74, 1
          %s264 = smul.addr %s263, 24
          %s265 = scalar_lea.vmem [#allocation6], %s264
          %s267 = ssub.s32 384, 384
          %268 = vsyncadd %s262, %s267
          %s269 = smul.addr %s36, 3
          %s270 = sadd.s32 %s37, %s269
          %s271 = smul.addr %s270, 128
          %s272 = scalar_lea.hbm %s1, %s271
          %s273 = sshll.u32 %s265, 4
          %s274 = int_to_ptr.vmem [resolvable:$true] %s273
          %279 = dma.hbm_to_vmem [thread:$0]  %s272, 384, %s274, %s262, 128, 128, 8
        $region24: #{tpu_custom_call.1} parent=19 // pred_fallthru
          _
        // Predicated region
        $region25: #{tpu_custom_call.1} parent=19 // pred_check
          %p280 = pneg %p112
        $region26: #{tpu_custom_call.1} parent=19 // pred_check_branch
          %282 = sbr.rel (%p280) target = $region28
        $region27: #{tpu_custom_call.1} parent=19 // pred_region
          %s283 = sand.u32 %s29, 1
          %s284 = scalar_lea.sflag [#allocation8], %s283
          %s285 = sand.u32 %s102, 1
          %s286 = smul.addr %s285, 24
          %s287 = scalar_lea.vmem [#allocation7], %s286
          %s289 = ssub.s32 384, 384
          %290 = vsyncadd %s284, %s289
          %s291 = smul.addr %s36, 3
          %s292 = sadd.s32 %s37, %s291
          %s293 = smul.addr %s292, 128
          %s294 = scalar_lea.hbm %s2, %s293
          %s295 = sshll.u32 %s287, 4
          %s296 = int_to_ptr.vmem [resolvable:$true] %s295
          %301 = dma.hbm_to_vmem [thread:$0]  %s294, 384, %s296, %s284, 128, 128, 8
        $region28: #{tpu_custom_call.1} parent=19 // pred_fallthru
          _
        // Predicated region
        $region29: #{tpu_custom_call.1} parent=19 // pred_check
          %p302 = pneg %p140
        $region30: #{tpu_custom_call.1} parent=19 // pred_check_branch
          %304 = sbr.rel (%p302) target = $region32
        $region31: #{tpu_custom_call.1} parent=19 // pred_region
          %s305 = sand.u32 %s29, 1
          %s306 = scalar_lea.sflag [#allocation8], %s305
          %s307 = sand.u32 %s130, 1
          %s308 = smul.addr %s307, 8
          %s309 = scalar_lea.vmem [#allocation9], %s308
          %s311 = ssub.s32 128, 128
          %312 = vsyncadd %s306, %s311
          %s313 = sadd.s32 %s37, %s36
          %s314 = smul.addr %s313, 128
          %s315 = scalar_lea.hbm %s3, %s314
          %s317 = sshll.u32 %s309, 4
          %s318 = int_to_ptr.vmem [resolvable:$true] %s317
          %320 = dma.hbm_to_vmem [thread:$0]  %s315, 128, %s318, %s306
        $region32: #{tpu_custom_call.1} parent=19 // pred_fallthru
          _
        // Predicated region
        $region33: #{tpu_custom_call.1} parent=19 // pred_check
          %p321 = pneg %p168
        $region34: #{tpu_custom_call.1} parent=19 // pred_check_branch
          %323 = sbr.rel (%p321) target = $region36
        $region35: #{tpu_custom_call.1} parent=19 // pred_region
          %s324 = sand.u32 %s158, 1
          %s325 = scalar_lea.sflag [#allocation11], %s324
          %s326 = sand.u32 %s158, 1
          %s327 = smul.addr %s326, 24
          %s328 = scalar_lea.vmem [#allocation10], %s327
          %s330 = ssub.s32 384, 384
          %331 = vsyncadd %s325, %s330
          %s332 = smul.addr %s36, 3
          %s333 = sadd.s32 %s37, %s332
          %s334 = smul.addr %s333, 128
          %s335 = scalar_lea.hbm %s4, %s334
          %s336 = sshll.u32 %s328, 4
          %s337 = int_to_ptr.vmem [resolvable:$true] %s336
          %342 = dma.hbm_to_vmem [thread:$0]  %s335, 384, %s337, %s325, 128, 128, 8
        $region36: #{tpu_custom_call.1} parent=19 // pred_fallthru
          _
      $region20: #{tpu_custom_call.1} parent=5 // pred_fallthru
        _
      %p343 = scmp.le.s32.totalorder 1, %s29
      %p344 = scmp.lt.s32.totalorder %s29, 3
      %p345 = pnand %p343, %p344
      %p346 = pneg %p345
      // Predicated region
      $region37: #{tpu_custom_call.1} parent=5 // pred_check
        _
      $region38: #{tpu_custom_call.1} parent=5 // pred_check_branch
        %348 = sbr.rel (%p345) target = $region40
      $region39: #{tpu_custom_call.1} parent=5 // pred_region
        %s349 = ssub.s32 %s29, 1
        // Predicated region
        $region41: #{tpu_custom_call.1} parent=39 // pred_check
          %p350 = pneg %p62
        $region42: #{tpu_custom_call.1} parent=39 // pred_check_branch
          %352 = sbr.rel (%p350) target = $region44
        $region43: #{tpu_custom_call.1} parent=39 // pred_region
          %353 = dma.done [#allocation5], 16
        $region44: #{tpu_custom_call.1} parent=39 // pred_fallthru
          _
        %s354 = sand.u32 %s77, 1
        %s355 = scalar_lea.sflag [#allocation3], %s354
        %s356 = sand.u32 %s77, 1
        %s357 = smul.addr %s356, 24
        %s358 = scalar_lea.vmem [#allocation6], %s357
        // Predicated region
        $region45: #{tpu_custom_call.1} parent=39 // pred_check
          %p359 = pneg %p90
        $region46: #{tpu_custom_call.1} parent=39 // pred_check_branch
          %361 = sbr.rel (%p359) target = $region48
        $region47: #{tpu_custom_call.1} parent=39 // pred_region
          %362 = dma.done %s355, 384
        $region48: #{tpu_custom_call.1} parent=39 // pred_fallthru
          _
        %s363 = sand.u32 %s34, 1
        %s364 = scalar_lea.sflag [#allocation8], %s363
        %s365 = sand.u32 %s105, 1
        %s366 = smul.addr %s365, 24
        %s367 = scalar_lea.vmem [#allocation7], %s366
        // Predicated region
        $region49: #{tpu_custom_call.1} parent=39 // pred_check
          %p368 = pneg %p118
        $region50: #{tpu_custom_call.1} parent=39 // pred_check_branch
          %370 = sbr.rel (%p368) target = $region52
        $region51: #{tpu_custom_call.1} parent=39 // pred_region
          %371 = dma.done %s364, 384
        $region52: #{tpu_custom_call.1} parent=39 // pred_fallthru
          _
        %s372 = sand.u32 %s34, 1
        %s373 = scalar_lea.sflag [#allocation8], %s372
        %s374 = sand.u32 %s133, 1
        %s375 = smul.addr %s374, 8
        %s376 = scalar_lea.vmem [#allocation9], %s375
        // Predicated region
        $region53: #{tpu_custom_call.1} parent=39 // pred_check
          %p377 = pneg %p146
        $region54: #{tpu_custom_call.1} parent=39 // pred_check_branch
          %379 = sbr.rel (%p377) target = $region56
        $region55: #{tpu_custom_call.1} parent=39 // pred_region
          %380 = dma.done %s373, 128
        $region56: #{tpu_custom_call.1} parent=39 // pred_fallthru
          _
        %s381 = sand.u32 %s161, 1
        %s382 = scalar_lea.sflag [#allocation11], %s381
        %s383 = sand.u32 %s161, 1
        %s384 = smul.addr %s383, 24
        %s385 = scalar_lea.vmem [#allocation10], %s384
        // Predicated region
        $region57: #{tpu_custom_call.1} parent=39 // pred_check
          %p386 = pneg %p174
        $region58: #{tpu_custom_call.1} parent=39 // pred_check_branch
          %388 = sbr.rel (%p386) target = $region60
        $region59: #{tpu_custom_call.1} parent=39 // pred_region
          %389 = dma.done %s382, 384
        $region60: #{tpu_custom_call.1} parent=39 // pred_fallthru
          _
        %390 = sfence
        %p391 = pneg %p62
        %p392 = pneg %p59
        %s393 = sand.u32 %s77, 1
        %s394 = scalar_lea.sflag [#allocation3], %s393
        %s395 = sand.u32 %s77, 1
        %s396 = smul.addr %s395, 24
        %s397 = scalar_lea.vmem [#allocation6], %s396
        %p398 = pneg %p90
        %p399 = pneg %p87
        %s400 = sand.u32 %s34, 1
        %s401 = scalar_lea.sflag [#allocation8], %s400
        %s402 = sand.u32 %s105, 1
        %s403 = smul.addr %s402, 24
        %s404 = scalar_lea.vmem [#allocation7], %s403
        %p405 = pneg %p118
        %p406 = pneg %p115
        %s407 = sand.u32 %s34, 1
        %s408 = scalar_lea.sflag [#allocation8], %s407
        %s409 = sand.u32 %s133, 1
        %s410 = smul.addr %s409, 8
        %s411 = scalar_lea.vmem [#allocation9], %s410
        %p412 = pneg %p146
        %p413 = pneg %p143
        %s414 = sand.u32 %s161, 1
        %s415 = scalar_lea.sflag [#allocation11], %s414
        %s416 = sand.u32 %s161, 1
        %s417 = smul.addr %s416, 24
        %s418 = scalar_lea.vmem [#allocation10], %s417
        %p419 = pneg %p174
        %p420 = pneg %p171
        %p421 = pneg %p202
        %p422 = pneg %p199
        %s423 = sand.u32 %s189, 1
        %s424 = scalar_lea.sflag [#allocation4], %s423
        %s425 = sand.u32 %s189, 1
        %s426 = smul.addr %s425, 8
        %s427 = scalar_lea.vmem [#allocation12], %s426
        %p428 = pneg %p230
        %p429 = pneg %p227
        %s430 = sand.u32 %s217, 1
        %s431 = scalar_lea.sflag [#allocation14], %s430
        %s432 = sand.u32 %s217, 1
        %s433 = smul.addr %s432, 24
        %s434 = scalar_lea.vmem [#allocation13], %s433
        %s435 = sld [smem:[#allocation2]]
        %s436 = sld [smem:[#allocation2 + $0x1]]
        %v437 = vld [vmem:[%s358] sm:$0xff]
        %v438 = vld [vmem:[%s358 + $0x8] sm:$0xff]
        %v439 = vld [vmem:[%s358 + $0x10] sm:$0xff]
        %v440 = vld [vmem:[%s367] sm:$0xff]
        %v441 = vld [vmem:[%s367 + $0x8] sm:$0xff]
        %v442 = vld [vmem:[%s367 + $0x10] sm:$0xff]
        %v443 = vld [vmem:[%s376] sm:$0xff]
        %v444 = vld [vmem:[%s385] sm:$0xff]
        %v445 = vld [vmem:[%s385 + $0x8] sm:$0xff]
        %v446 = vld [vmem:[%s385 + $0x10] sm:$0xff]
        %v447 = vsub.f32 1.0, %v440
        %v448 = vsub.f32 1.0, %v441
        %v449 = vsub.f32 1.0, %v442
        %vm450 = vcmp.eq.f32.partialorder %v447, 0.0
        %vm451 = vcmp.eq.f32.partialorder %v448, 0.0
        %vm452 = vcmp.eq.f32.partialorder %v449, 0.0
        %v453 = vsel %vm450, 1e-07, %v447
        %v454 = vsel %vm451, 1e-07, %v448
        %v455 = vsel %vm452, 1e-07, %v449
        %v456 = vrcp.pop %v453
        %v457 = vrcp.pop %v454
        %v458 = vrcp.pop %v455
        %v459 = vadd.f32 %v456, %v457
        %v460 = vadd.f32 %v459, %v458
        %v461 = vadd.f32 %v437, %v438
        %v462 = vadd.f32 %v461, %v439
        %v463 = vsub.f32 3.0, %v462
        %v464 = vmul.f32 %v443, %v460
        %v465 = vstv %s435
        %v466 = vmul.f32 %v465, %v464
        %v467 = vadd.f32 %v463, %v466
        %v468 = vadd.f32 %v440, %v441
        %v469 = vadd.f32 %v468, %v442
        %v470 = vsub.f32 3.0, %v469
        %v471 = vmul.f32 %v465, %v460
        %v472 = vadd.f32 %v470, %v471
        %vm473 = vcmp.eq.f32.partialorder %v472, 0.0
        %v474 = vsel %vm473, 1e-07, %v472
        %v475 = vrcp.pop %v474
        %v476 = vmul.f32 %v467, %v475
        %v477 = vmax.f32 %v476, 0.05
        %v478 = vmin.f32 %v477, 0.999
        %479 = vst [vmem:[%s427] sm:$0xff] %v478
        %v480 = vmul.f32 %v478, %v478
        %v481 = vstv %s436
        %v482 = vadd.f32 %v480, %v481
        %vm483 = vcmp.eq.f32.partialorder %v482, 0.0
        %v484 = vsel %vm483, 1e-07, %v482
        %v485 = vmul.f32 %v478, %v437
        %v486 = vmul.f32 %v478, %v438
        %v487 = vmul.f32 %v478, %v439
        %v488 = vsub.f32 %v480, %v478
        %v489 = vadd.f32 %v485, %v488
        %v490 = vadd.f32 %v486, %v488
        %v491 = vadd.f32 %v487, %v488
        %v492 = vmul.f32 %v481, %v444
        %v493 = vmul.f32 %v481, %v445
        %v494 = vmul.f32 %v481, %v446
        %v495 = vadd.f32 %v489, %v492
        %v496 = vadd.f32 %v490, %v493
        %v497 = vadd.f32 %v491, %v494
        %v498 = vrcp.pop %v484
        %v499 = vmul.f32 %v495, %v498
        %v500 = vmul.f32 %v496, %v498
        %v501 = vmul.f32 %v497, %v498
        %v502 = vmax.f32 %v499, 0.0
        %v503 = vmax.f32 %v500, 0.0
        %v504 = vmax.f32 %v501, 0.0
        %v505 = vmin.f32 %v502, 1.0
        %v506 = vmin.f32 %v503, 1.0
        %v507 = vmin.f32 %v504, 1.0
        %508 = vst [vmem:[%s434] sm:$0xff] %v505
        %509 = vst [vmem:[%s434 + $0x8] sm:$0xff] %v506
        %510 = vst [vmem:[%s434 + $0x10] sm:$0xff] %v507
        %s511 = sand.u32 %s189, 1
        %s512 = scalar_lea.sflag [#allocation4], %s511
        %s513 = sand.u32 %s189, 1
        %s514 = smul.addr %s513, 8
        %s515 = scalar_lea.vmem [#allocation12], %s514
        %s516 = sand.u32 %s217, 1
        %s517 = scalar_lea.sflag [#allocation14], %s516
        %s518 = sand.u32 %s217, 1
        %s519 = smul.addr %s518, 24
        %s520 = scalar_lea.vmem [#allocation13], %s519
        // Predicated region
        $region61: #{tpu_custom_call.1} parent=39 // pred_check
          %p521 = pneg %p199
        $region62: #{tpu_custom_call.1} parent=39 // pred_check_branch
          %523 = sbr.rel (%p521) target = $region64
        $region63: #{tpu_custom_call.1} parent=39 // pred_region
          %s525 = ssub.s32 128, 128
          %526 = vsyncadd %s512, %s525
          %s527 = sadd.s32 %s39, %s38
          %s528 = smul.addr %s527, 128
          %s529 = scalar_lea.hbm %s5, %s528
          %s531 = sshll.u32 %s515, 4
          %s532 = int_to_ptr.vmem [resolvable:$true] %s531
          %534 = dma.vmem_to_hbm [thread:$0]  %s532, 128, %s529, %s512
        $region64: #{tpu_custom_call.1} parent=39 // pred_fallthru
          _
        // Predicated region
        $region65: #{tpu_custom_call.1} parent=39 // pred_check
          %p535 = pneg %p227
        $region66: #{tpu_custom_call.1} parent=39 // pred_check_branch
          %537 = sbr.rel (%p535) target = $region68
        $region67: #{tpu_custom_call.1} parent=39 // pred_region
          %s539 = ssub.s32 384, 384
          %540 = vsyncadd %s517, %s539
          %s541 = smul.addr %s38, 3
          %s542 = sadd.s32 %s39, %s541
          %s543 = smul.addr %s542, 128
          %s544 = scalar_lea.hbm %s6, %s543
          %s545 = sshll.u32 %s520, 4
          %s546 = int_to_ptr.vmem [resolvable:$true] %s545
          %551 = dma.vmem_to_hbm [thread:$0]  %s546, 384, %s544, %s517, 128, 128, 8
        $region68: #{tpu_custom_call.1} parent=39 // pred_fallthru
          _
      $region40: #{tpu_custom_call.1} parent=5 // pred_fallthru
        _
      %p552 = scmp.le.s32.totalorder 2, %s29
      // Predicated region
      $region69: #{tpu_custom_call.1} parent=5 // pred_check
        %p553 = pneg %p552
      $region70: #{tpu_custom_call.1} parent=5 // pred_check_branch
        %555 = sbr.rel (%p553) target = $region72
      $region71: #{tpu_custom_call.1} parent=5 // pred_region
        %s556 = ssub.s32 %s29, 2
        // Predicated region
        $region73: #{tpu_custom_call.1} parent=71 // pred_check
          %p557 = pneg %p205
        $region74: #{tpu_custom_call.1} parent=71 // pred_check_branch
          %559 = sbr.rel (%p557) target = $region76
        $region75: #{tpu_custom_call.1} parent=71 // pred_region
          %s560 = sand.u32 %s190, 1
          %s561 = scalar_lea.sflag [#allocation4], %s560
          %s562 = sand.u32 %s190, 1
          %s563 = smul.addr %s562, 8
          %s564 = scalar_lea.vmem [#allocation12], %s563
          %565 = dma.done %s561, 128
        $region76: #{tpu_custom_call.1} parent=71 // pred_fallthru
          _
        // Predicated region
        $region77: #{tpu_custom_call.1} parent=71 // pred_check
          %p566 = pneg %p233
        $region78: #{tpu_custom_call.1} parent=71 // pred_check_branch
          %568 = sbr.rel (%p566) target = $region80
        $region79: #{tpu_custom_call.1} parent=71 // pred_region
          %s569 = sand.u32 %s218, 1
          %s570 = scalar_lea.sflag [#allocation14], %s569
          %s571 = sand.u32 %s218, 1
          %s572 = smul.addr %s571, 24
          %s573 = scalar_lea.vmem [#allocation13], %s572
          %574 = dma.done %s570, 384
        $region80: #{tpu_custom_call.1} parent=71 // pred_fallthru
          _
      $region72: #{tpu_custom_call.1} parent=5 // pred_fallthru
        _
    $region6: #{tpu_custom_call.1} parent=1 // loop_footer
      %s33 = sadd.s32 1, %s29
    $region7: #{tpu_custom_call.1} parent=1 // loop_footer_branch
      %28 = sbr.rel target = $region3
    $region8: #{tpu_custom_call.1} parent=1 // loop_exit
      _
    %575 = vsyncpa [#allocation3], 1
    %s576 = scalar_lea.sflag [#allocation3], 1
    %577 = vsyncpa %s576, 1
    %578 = vsyncpa [#allocation8], 1
    %s579 = scalar_lea.sflag [#allocation8], 1
    %580 = vsyncpa %s579, 1
    %581 = vsyncpa [#allocation11], 1
    %s582 = scalar_lea.sflag [#allocation11], 1
    %583 = vsyncpa %s582, 1
    %584 = vsyncpa [#allocation4], 1
    %s585 = scalar_lea.sflag [#allocation4], 1
    %586 = vsyncpa %s585, 1
    %587 = vsyncpa [#allocation14], 1
    %s588 = scalar_lea.sflag [#allocation14], 1
    %589 = vsyncpa %s588, 1
    %590 = vsyncpa [#allocation5], 1
    %s591 = scalar_lea.sflag [#allocation5], 1
    %592 = vsyncpa %s591, 1

</llo_original>
